<compile_context>
chip_gen: v7x
topology: tpu7x:2x2x1
jax: 0.10.0
libtpu: 0.0.40
codegen_flags: <defaults>
</compile_context>

<pallas_src>
import functools

import jax
import jax.numpy as jnp
from jax import lax
from jax.experimental import pallas as pl
from jax.experimental.pallas import tpu as pltpu

# ----------------------------- problem sizes -----------------------------
B, CIN, H, W = 2, 4, 16, 16
COUT = 8
KH = KW = 3
NUM_CLASSES = 10


# ------------------------------ Pallas kernel ------------------------------
def _wrapper_kernel(x_ref,      # (B*CIN, H*W)           f32  raw input, rows = (b, c)
                    wbig_ref,   # (B*COUT, KH*KW*B*CIN)  f32  batch-block-diag conv W (1/std folded)
                    pbuf_ref,   # (16, 128)              f32  packed small params
                    out_ref,    # (B, NUM_CLASSES)       f32
                    *, h_dim, w_dim, batch, cout, num_classes):
    bc, hw = x_ref.shape        # (8, 256)
    bo = batch * cout           # 16

    # ---- packed small params: one DMA, sliced in-kernel ----
    wfc       = pbuf_ref[0:cout, 0:num_classes]                    # (COUT, 10)
    bfc       = pbuf_ref[cout:cout + 1, 0:num_classes]             # (1, 10)
    mean_col  = pbuf_ref[0:bc, num_classes:num_classes + 1]        # (B*CIN, 1)
    bconv_col = pbuf_ref[0:bo, num_classes + 1:num_classes + 2]    # (B*COUT, 1)

    # ---- normalizer: multiplicative 1/std is folded into wbig; only the mean
    # subtraction runs here, which keeps the zero-padded-border semantics of the
    # original normalize -> SAME-conv order. Lane-dense (8, 256) VPU op. ----
    xn = x_ref[...] - mean_col

    # Flat spatial index -> (h, w). W is a power of two -> shift/AND, no div/mod.
    col = lax.broadcasted_iota(jnp.int32, (bc, hw), 1)
    if w_dim & (w_dim - 1) == 0:
        hh = col >> (w_dim.bit_length() - 1)
        ww = col & (w_dim - 1)
    else:  # fallback for non-power-of-two widths
        hh = col // w_dim
        ww = col % w_dim
    # Four boundary masks, each comparison issued exactly once (hoisted out of the loop).
    row_ok = {-1: hh >= 1, 1: hh < h_dim - 1}
    col_ok = {-1: ww >= 1, 1: ww < w_dim - 1}

    # ---- im2col via XLU lane-rotations + VPU boundary masks (SAME padding).
    # piece_(dh,dw)[r, h*W+w] = xn[r, (h+dh)*W + (w+dw)]  if in-bounds else 0.
    # Wrapped reads from the rotation are always covered by the boundary masks. ----
    pieces = []
    for dh in (-1, 0, 1):
        for dw in (-1, 0, 1):
            s = dh * w_dim + dw
            piece = xn if s == 0 else pltpu.roll(xn, shift=(-s) % hw, axis=1)
            valid = None
            if dh in row_ok:
                valid = row_ok[dh]
            if dw in col_ok:
                valid = col_ok[dw] if valid is None else valid & col_ok[dw]
            if valid is not None:
                piece = jnp.where(valid, piece, 0.0)
            pieces.append(piece)
    # NOTE(v5e): if the single vst slot binds there, replace this concat with 9
    # accumulated (B*COUT,B*CIN)@(B*CIN,HW) matmuls on the vreg-resident pieces.
    im2col = jnp.concatenate(pieces, axis=0)          # (72, 256), lane-dense

    # ---- single fused conv matmul on the MXU: (16, 72) @ (72, 256) -> (16, 256),
    # rows ordered (b, cout); the batch-block-diagonal weight handles both images. ----
    acc = jnp.dot(wbig_ref[...], im2col, preferred_element_type=jnp.float32)

    # ---- conv bias + ReLU on the flat lane-dense accumulator, then global average
    # pool along the lane axis ----
    y = jnp.maximum(acc + bconv_col, 0.0)                     # (16, 256)
    pooled = jnp.mean(y.reshape(batch, cout, hw), axis=-1)    # (B, COUT)

    # ---- final linear classifier (tiny (2,10) masked store: negligible here) ----
    out_ref[...] = jnp.dot(pooled, wfc, preferred_element_type=jnp.float32) + bfc


# --------------------- one-time parameter preprocessing ---------------------
def prepare_params(params):
    """Hoisted out of the per-call path: build the two parameter operands once."""
    mean, std, wconv, bconv, wfc, bfc = params
    kk = KH * KW

    # Fold 1/std into the conv weights (exact; scaling preserves padded zeros),
    # then build the batch-block-diagonal im2col weight:
    #   wbig[b*COUT+o, t*B*CIN + b2*CIN + c] = delta(b,b2) * wconv[t][c,o] / std[c]
    ws = (wconv / std[None, None, :, None]).astype(jnp.float32)   # (KH, KW, CIN, COUT)
    wtaps = ws.reshape(kk, CIN, COUT)                             # tap-major == kernel loop order
    wbig = jnp.einsum("bd,tco->botdc", jnp.eye(B, dtype=jnp.float32), wtaps)
    wbig = wbig.reshape(B * COUT, kk * B * CIN)                   # (16, 72)

    # Pack the small params into one (8,128)-aligned buffer (single DMA):
    #   [0:COUT,   0:10] = wfc       [COUT,     0:10] = bfc
    #   [0:B*CIN,  10  ] = per-(b,c)-row mean
    #   [0:B*COUT, 11  ] = per-(b,o)-row conv bias
    pbuf = jnp.zeros((16, 128), jnp.float32)
    pbuf = pbuf.at[0:COUT, 0:NUM_CLASSES].set(wfc.astype(jnp.float32))
    pbuf = pbuf.at[COUT, 0:NUM_CLASSES].set(bfc.astype(jnp.float32))
    pbuf = pbuf.at[0:B * CIN, NUM_CLASSES].set(jnp.tile(mean.astype(jnp.float32), (B,)))
    pbuf = pbuf.at[0:B * COUT, NUM_CLASSES + 1].set(jnp.tile(bconv.astype(jnp.float32), (B,)))
    return wbig, pbuf


# ------------------------------ jitted forward ------------------------------
@functools.partial(jax.jit, static_argnames=("if_attack",))
def model_wrapper_forward(x_nchw, wbig, pbuf, y=None, if_attack=True):
    """Pallas equivalent of ModelWrapper.forward(X, Y=None, if_attack=True)."""
    del y, if_attack  # wrapper passthrough; synthetic model ignores both
    b, cin, h, w = x_nchw.shape

    # Plain reshape NCHW -> (B*CIN, H*W): lane-dense, no transpose, no HBM round trip.
    x2d = x_nchw.reshape(b * cin, h * w).astype(jnp.float32)

    kernel = functools.partial(_wrapper_kernel, h_dim=h, w_dim=w,
                               batch=b, cout=COUT, num_classes=NUM_CLASSES)
    vmem = pl.BlockSpec(memory_space=pltpu.MemorySpace.VMEM)
    # Gridless single-TC invocation; whole problem is ~100 KB of VMEM.
    # TODO(synk): at real image sizes add a ('parallel',) batch/row-block grid
    # (v7x: 2 TCs/chip, 64 MiB VMEM) and size the per-block im2col slab for
    # double buffering; grow B*COUT / K toward the 256x256 MXU before splitting.
    return pl.pallas_call(
        kernel,
        out_shape=jax.ShapeDtypeStruct((b, NUM_CLASSES), jnp.float32),
        in_specs=[vmem, vmem, vmem],
        out_specs=vmem,
    )(x2d, wbig, pbuf)


# ------------------------- pure-JAX reference model -------------------------
def reference_forward(x_nchw, params):
    mean, std, wconv, bconv, wfc, bfc = params
    x = (x_nchw - mean[None, :, None, None]) / std[None, :, None, None]
    xh = jnp.transpose(x, (0, 2, 3, 1))
    y = lax.conv_general_dilated(
        xh, wconv, window_strides=(1, 1), padding=((1, 1), (1, 1)),
        dimension_numbers=("NHWC", "HWIO", "NHWC"))
    y = jnp.maximum(y + bconv.reshape(1, 1, 1, -1), 0.0)
    pooled = jnp.mean(y, axis=(1, 2))
    return pooled @ wfc + bfc


# ---------------------------------- main ----------------------------------
if __name__ == "__main__":
    key = jax.random.PRNGKey(0)
    kx, kw1, kb1, kw2, kb2 = jax.random.split(key, 5)

    # Deterministic synthetic parameters.
    mean = jnp.array([0.485, 0.456, 0.406, 0.5], dtype=jnp.float32)     # (CIN,)
    std = jnp.array([0.229, 0.224, 0.225, 0.25], dtype=jnp.float32)     # (CIN,)
    wconv = 0.1 * jax.random.normal(kw1, (KH, KW, CIN, COUT), jnp.float32)
    bconv = 0.1 * jax.random.normal(kb1, (COUT,), jnp.float32)
    wfc = 0.1 * jax.random.normal(kw2, (COUT, NUM_CLASSES), jnp.float32)
    bfc = 0.1 * jax.random.normal(kb2, (NUM_CLASSES,), jnp.float32)
    params = (mean, std, wconv, bconv, wfc, bfc)

    # Input in PyTorch NCHW convention.
    x = jax.random.uniform(kx, (B, CIN, H, W), jnp.float32)

    # One-time parameter preprocessing (hoisted off the per-call path).
    wbig, pbuf = jax.block_until_ready(prepare_params(params))

    out = model_wrapper_forward(x, wbig, pbuf, if_attack=True)
    out = jax.block_until_ready(out)

    ref = jax.block_until_ready(reference_forward(x, params))
    assert out.shape == (B, NUM_CLASSES)
    assert jnp.allclose(out, ref, atol=1e-4, rtol=1e-4), (out, ref)

    print("KERNEL_OK")
</pallas_src>

<mosaic_0001>
module attributes {stable_mosaic.version = 11 : i64} {
  func.func @_wrapper_kernel(%arg0: memref<8x256xf32, #tpu.memory_space<vmem>>, %arg1: memref<16x72xf32, #tpu.memory_space<vmem>>, %arg2: memref<16x128xf32, #tpu.memory_space<vmem>>, %arg3: memref<2x10xf32, #tpu.memory_space<vmem>>) attributes {dimension_semantics = [], scalar_prefetch = 0 : i64, scratch_operands = 0 : i64, tpu.core_type = #tpu.core_type<tc>} {
    %c0 = arith.constant 0 : index
    %c0_0 = arith.constant 0 : index
    %0 = vector.load %arg2[%c0, %c0_0] : memref<16x128xf32, #tpu.memory_space<vmem>>, vector<8x10xf32>
    %c8 = arith.constant 8 : index
    %c0_1 = arith.constant 0 : index
    %1 = vector.load %arg2[%c8, %c0_1] : memref<16x128xf32, #tpu.memory_space<vmem>>, vector<1x10xf32>
    %c0_2 = arith.constant 0 : index
    %c10 = arith.constant 10 : index
    %2 = vector.load %arg2[%c0_2, %c10] : memref<16x128xf32, #tpu.memory_space<vmem>>, vector<8x1xf32>
    %c0_3 = arith.constant 0 : index
    %c11 = arith.constant 11 : index
    %3 = vector.load %arg2[%c0_3, %c11] : memref<16x128xf32, #tpu.memory_space<vmem>>, vector<16x1xf32>
    %c0_4 = arith.constant 0 : index
    %c0_5 = arith.constant 0 : index
    %4 = vector.load %arg0[%c0_4, %c0_5] : memref<8x256xf32, #tpu.memory_space<vmem>>, vector<8x256xf32>
    %5 = vector.broadcast %2 : vector<8x1xf32> to vector<8x256xf32>
    %6 = arith.subf %4, %5 : vector<8x256xf32>
    %7 = tpu.iota {dimensions = array<i32: 1>} : vector<8x256xi32>
    %c4_i32 = arith.constant 4 : i32
    %8 = vector.broadcast %c4_i32 : i32 to vector<8x256xi32>
    %9 = arith.shrsi %7, %8 : vector<8x256xi32>
    %c15_i32 = arith.constant 15 : i32
    %10 = vector.broadcast %c15_i32 : i32 to vector<8x256xi32>
    %11 = arith.andi %7, %10 : vector<8x256xi32>
    %c1_i32 = arith.constant 1 : i32
    %12 = vector.broadcast %c1_i32 : i32 to vector<8x256xi32>
    %13 = arith.cmpi sge, %9, %12 : vector<8x256xi32>
    %c15_i32_6 = arith.constant 15 : i32
    %14 = vector.broadcast %c15_i32_6 : i32 to vector<8x256xi32>
    %15 = arith.cmpi slt, %9, %14 : vector<8x256xi32>
    %c1_i32_7 = arith.constant 1 : i32
    %16 = vector.broadcast %c1_i32_7 : i32 to vector<8x256xi32>
    %17 = arith.cmpi sge, %11, %16 : vector<8x256xi32>
    %c15_i32_8 = arith.constant 15 : i32
    %18 = vector.broadcast %c15_i32_8 : i32 to vector<8x256xi32>
    %19 = arith.cmpi slt, %11, %18 : vector<8x256xi32>
    %c17_i32 = arith.constant 17 : i32
    %20 = tpu.dynamic_rotate %6 by %c17_i32 dim 1 : vector<8x256xf32>, i32 -> vector<8x256xf32>
    %21 = arith.andi %13, %17 : vector<8x256xi1>
    %cst = arith.constant 0.000000e+00 : f32
    %22 = vector.broadcast %cst : f32 to vector<8x256xf32>
    %23 = arith.select %21, %20, %22 : vector<8x256xi1>, vector<8x256xf32>
    %c16_i32 = arith.constant 16 : i32
    %24 = tpu.dynamic_rotate %6 by %c16_i32 dim 1 : vector<8x256xf32>, i32 -> vector<8x256xf32>
    %cst_9 = arith.constant 0.000000e+00 : f32
    %25 = vector.broadcast %cst_9 : f32 to vector<8x256xf32>
    %26 = arith.select %13, %24, %25 : vector<8x256xi1>, vector<8x256xf32>
    %c15_i32_10 = arith.constant 15 : i32
    %27 = tpu.dynamic_rotate %6 by %c15_i32_10 dim 1 : vector<8x256xf32>, i32 -> vector<8x256xf32>
    %28 = arith.andi %13, %19 : vector<8x256xi1>
    %cst_11 = arith.constant 0.000000e+00 : f32
    %29 = vector.broadcast %cst_11 : f32 to vector<8x256xf32>
    %30 = arith.select %28, %27, %29 : vector<8x256xi1>, vector<8x256xf32>
    %c1_i32_12 = arith.constant 1 : i32
    %31 = tpu.dynamic_rotate %6 by %c1_i32_12 dim 1 : vector<8x256xf32>, i32 -> vector<8x256xf32>
    %cst_13 = arith.constant 0.000000e+00 : f32
    %32 = vector.broadcast %cst_13 : f32 to vector<8x256xf32>
    %33 = arith.select %17, %31, %32 : vector<8x256xi1>, vector<8x256xf32>
    %c255_i32 = arith.constant 255 : i32
    %34 = tpu.dynamic_rotate %6 by %c255_i32 dim 1 : vector<8x256xf32>, i32 -> vector<8x256xf32>
    %cst_14 = arith.constant 0.000000e+00 : f32
    %35 = vector.broadcast %cst_14 : f32 to vector<8x256xf32>
    %36 = arith.select %19, %34, %35 : vector<8x256xi1>, vector<8x256xf32>
    %c241_i32 = arith.constant 241 : i32
    %37 = tpu.dynamic_rotate %6 by %c241_i32 dim 1 : vector<8x256xf32>, i32 -> vector<8x256xf32>
    %38 = arith.andi %15, %17 : vector<8x256xi1>
    %cst_15 = arith.constant 0.000000e+00 : f32
    %39 = vector.broadcast %cst_15 : f32 to vector<8x256xf32>
    %40 = arith.select %38, %37, %39 : vector<8x256xi1>, vector<8x256xf32>
    %c240_i32 = arith.constant 240 : i32
    %41 = tpu.dynamic_rotate %6 by %c240_i32 dim 1 : vector<8x256xf32>, i32 -> vector<8x256xf32>
    %cst_16 = arith.constant 0.000000e+00 : f32
    %42 = vector.broadcast %cst_16 : f32 to vector<8x256xf32>
    %43 = arith.select %15, %41, %42 : vector<8x256xi1>, vector<8x256xf32>
    %c239_i32 = arith.constant 239 : i32
    %44 = tpu.dynamic_rotate %6 by %c239_i32 dim 1 : vector<8x256xf32>, i32 -> vector<8x256xf32>
    %45 = arith.andi %15, %19 : vector<8x256xi1>
    %cst_17 = arith.constant 0.000000e+00 : f32
    %46 = vector.broadcast %cst_17 : f32 to vector<8x256xf32>
    %47 = arith.select %45, %44, %46 : vector<8x256xi1>, vector<8x256xf32>
    %48 = tpu.concatenate %23, %26, %30, %33, %6, %36, %40, %43, %47 in 0 : vector<8x256xf32>, vector<8x256xf32>, vector<8x256xf32>, vector<8x256xf32>, vector<8x256xf32>, vector<8x256xf32>, vector<8x256xf32>, vector<8x256xf32>, vector<8x256xf32> -> vector<72x256xf32>
    %c0_18 = arith.constant 0 : index
    %c0_19 = arith.constant 0 : index
    %49 = vector.load %arg1[%c0_18, %c0_19] : memref<16x72xf32, #tpu.memory_space<vmem>>, vector<16x72xf32>
    %cst_20 = arith.constant dense<0.000000e+00> : vector<16x256xf32>
    %50 = tpu.matmul %49, %48, %cst_20 {dimension_numbers = #tpu.dot_dimension_numbers<[1], [0], [0], [1], [0, 0, 1, 1], [], []>} : vector<16x72xf32>, vector<72x256xf32>, vector<16x256xf32> -> vector<16x256xf32>
    %51 = vector.broadcast %3 : vector<16x1xf32> to vector<16x256xf32>
    %52 = arith.addf %50, %51 : vector<16x256xf32>
    %cst_21 = arith.constant 0.000000e+00 : f32
    %53 = vector.broadcast %cst_21 : f32 to vector<16x256xf32>
    %54 = arith.maximumf %52, %53 : vector<16x256xf32>
    %55 = vector.shape_cast %54 : vector<16x256xf32> to vector<2x8x256xf32>
    %cst_22 = arith.constant dense<0.000000e+00> : vector<2x8xf32>
    %56 = vector.multi_reduction <add>, %55, %cst_22 [2] : vector<2x8x256xf32> to vector<2x8xf32>
    %cst_23 = arith.constant 2.560000e+02 : f32
    %57 = vector.broadcast %cst_23 : f32 to vector<2x8xf32>
    %58 = arith.divf %56, %57 : vector<2x8xf32>
    %cst_24 = arith.constant dense<0.000000e+00> : vector<2x10xf32>
    %59 = tpu.matmul %58, %0, %cst_24 {dimension_numbers = #tpu.dot_dimension_numbers<[1], [0], [0], [1], [0, 0, 1, 1], [], []>} : vector<2x8xf32>, vector<8x10xf32>, vector<2x10xf32> -> vector<2x10xf32>
    %60 = vector.broadcast %1 : vector<1x10xf32> to vector<2x10xf32>
    %61 = arith.addf %59, %60 : vector<2x10xf32>
    %c0_25 = arith.constant 0 : index
    %c0_26 = arith.constant 0 : index
    %62 = vector.load %arg3[%c0_25, %c0_26] : memref<2x10xf32, #tpu.memory_space<vmem>>, vector<2x10xf32>
    tpu.vector_store %arg3[%c0_25, %c0_26], %61 {strides = array<i32>} : memref<2x10xf32, #tpu.memory_space<vmem>>, vector<2x10xf32>,
    return
  }
}

</mosaic_0001>

<llo_original>
// kernel: model_wrapper_forward.1
$region0: #{model_wrapper_forward.1}
  #allocation0 [shape = 'u32[]', space=smem, size = 0x4, offset = 0x4, fixed_abs, tag = 'smem constant byte address 0x4 - core index']
  #allocation1 [shape = 'u32[144,128]{1,0:T(1,128)}', space=vmem, size = 0x12000, scoped, tag = 'internal scratch']
  %s0 = inlined_call_operand.vmem [shape: f32[8,256], index: 0, kind: input, shape index: {}]
  %s1 = inlined_call_operand.vmem [shape: f32[16,72], index: 1, kind: input, shape index: {}]
  %s2 = inlined_call_operand.vmem [shape: f32[16,128], index: 2, kind: input, shape index: {}]
  %s3 = inlined_call_operand.hbm [shape: f32[2,10], index: 3, kind: output, shape index: {}]
  %s4 = sld [smem:[#allocation0]]
  $region22: #{model_wrapper_forward.1} parent=0
    _
  %s6 = ssub.s32 1, %s4
  %s7 = scalar_select 0, %s6, %s4
  $region1: #{model_wrapper_forward.1} parent=0
    #allocation2 [shape = 'u8[1024]{0}', space=vmem, size = 0x400, scoped, tag = 'output window, operand 0, single buffered']
    #allocation3 [shape = 's32[1]{0}', space=sflag, size = 0x4, scoped, tag = 'scoped memory for model_wrapper_forward.1']
    %8 = vsyncpa [#allocation3], 0
    // Predicated region
    $region2: #{model_wrapper_forward.1} parent=1 // pred_check
      _
    $region3: #{model_wrapper_forward.1} parent=1 // pred_check_branch
      %10 = sbr.rel (0) target = $region5
    $region4: #{model_wrapper_forward.1} parent=1 // pred_region
      _
    $region5: #{model_wrapper_forward.1} parent=1 // pred_fallthru
      _
    // Predicated region
    $region6: #{model_wrapper_forward.1} parent=1 // pred_check
      _
    $region7: #{model_wrapper_forward.1} parent=1 // pred_check_branch
      %12 = sbr.rel (0) target = $region9
    $region8: #{model_wrapper_forward.1} parent=1 // pred_region
      _
    $region9: #{model_wrapper_forward.1} parent=1 // pred_fallthru
      _
    // Predicated region
    $region10: #{model_wrapper_forward.1} parent=1 // pred_check
      _
    $region11: #{model_wrapper_forward.1} parent=1 // pred_check_branch
      %14 = sbr.rel (0) target = $region13
    $region12: #{model_wrapper_forward.1} parent=1 // pred_region
      _
    $region13: #{model_wrapper_forward.1} parent=1 // pred_fallthru
      _
    %v15 = vld [vmem:[%s2] sm:$0xff]
    %v16 = vld [vmem:[%s2 + $0x8] sm:$0x1]
    %v17 = vld [vmem:[%s2] sm:$0xff]
    %v18 = vld [vmem:[%s2 + $0x8] sm:$0xff]
    %v19 = vld [vmem:[%s0] sm:$0xff]
    %v20 = vld [vmem:[%s0 + $0x8] sm:$0xff]
    %22 = vset.pattern.permute.xlu0 10
    %23 = vperm.xlu0 %22, %v15
    %v24 = vpop.permute.xlu0 %23
    %v26 = vsub.f32 %v19, %v24
    %v27 = vsub.f32 %v20, %v24
    %v28 = vlaneseq
    %v29 = vand.u32 %v28, 127
    %v30 = vadd.s32 %v29, 128
    %v31 = vshra.s32 %v29, 4
    %v32 = vshra.s32 %v30, 4
    %v33 = vand.u32 %v29, 15
    %v34 = vand.u32 %v30, 15
    %vm35 = vcmp.ge.s32.totalorder %v31, 1
    %vm36 = vcmp.ge.s32.totalorder %v32, 1
    %vm37 = vcmp.lt.s32.totalorder %v31, 15
    %vm38 = vcmp.lt.s32.totalorder %v32, 15
    %vm39 = vcmp.ge.s32.totalorder %v33, 1
    %vm40 = vcmp.ge.s32.totalorder %v34, 1
    %vm41 = vcmp.lt.s32.totalorder %v33, 15
    %vm42 = vcmp.lt.s32.totalorder %v34, 15
    %43 = vrot.lane.b32.xlu0 %v26, 17
    %v44 = vpop.permute.xlu0 %43
    %45 = vrot.lane.b32.xlu0 %v27, 17
    %v46 = vpop.permute.xlu0 %45
    %vm47 = vcmp.lt.s32.totalorder %v29, 17
    %v48 = vsel %vm47, %v44, %v46
    %v49 = vsel %vm47, %v46, %v44
    %vm50 = vmand %vm35, %vm39
    %vm51 = vmand %vm36, %vm40
    %v52 = vsel %vm50, %v49, 0.0
    %v53 = vsel %vm51, %v48, 0.0
    %54 = vrot.lane.b32.xlu0 %v26, 16
    %v55 = vpop.permute.xlu0 %54
    %56 = vrot.lane.b32.xlu0 %v27, 16
    %v57 = vpop.permute.xlu0 %56
    %vm58 = vcmp.lt.s32.totalorder %v29, 16
    %v59 = vsel %vm58, %v55, %v57
    %v60 = vsel %vm58, %v57, %v55
    %v61 = vsel %vm35, %v60, 0.0
    %v62 = vsel %vm36, %v59, 0.0
    %63 = vrot.lane.b32.xlu0 %v26, 15
    %v64 = vpop.permute.xlu0 %63
    %65 = vrot.lane.b32.xlu0 %v27, 15
    %v66 = vpop.permute.xlu0 %65
    %vm67 = vcmp.lt.s32.totalorder %v29, 15
    %v68 = vsel %vm67, %v64, %v66
    %v69 = vsel %vm67, %v66, %v64
    %vm70 = vmand %vm35, %vm41
    %vm71 = vmand %vm36, %vm42
    %v72 = vsel %vm70, %v69, 0.0
    %v73 = vsel %vm71, %v68, 0.0
    %74 = vrot.lane.b32.xlu0 %v26, 1
    %v75 = vpop.permute.xlu0 %74
    %76 = vrot.lane.b32.xlu0 %v27, 1
    %v77 = vpop.permute.xlu0 %76
    %vm78 = vcmp.lt.s32.totalorder %v29, 1
    %v79 = vsel %vm78, %v75, %v77
    %v80 = vsel %vm78, %v77, %v75
    %v81 = vsel %vm39, %v80, 0.0
    %v82 = vsel %vm40, %v79, 0.0
    %83 = vrot.lane.b32.xlu0 %v26, 127
    %v84 = vpop.permute.xlu0 %83
    %85 = vrot.lane.b32.xlu0 %v27, 127
    %v86 = vpop.permute.xlu0 %85
    %vm87 = vcmp.lt.s32.totalorder %v29, 127
    %v88 = vsel %vm87, %v84, %v86
    %v89 = vsel %vm87, %v86, %v84
    %v90 = vsel %vm41, %v88, 0.0
    %v91 = vsel %vm42, %v89, 0.0
    %92 = vrot.lane.b32.xlu0 %v26, 113
    %v93 = vpop.permute.xlu0 %92
    %94 = vrot.lane.b32.xlu0 %v27, 113
    %v95 = vpop.permute.xlu0 %94
    %vm96 = vcmp.lt.s32.totalorder %v29, 113
    %v97 = vsel %vm96, %v93, %v95
    %v98 = vsel %vm96, %v95, %v93
    %vm99 = vmand %vm37, %vm39
    %vm100 = vmand %vm38, %vm40
    %v101 = vsel %vm99, %v97, 0.0
    %v102 = vsel %vm100, %v98, 0.0
    %103 = vrot.lane.b32.xlu0 %v26, 112
    %v104 = vpop.permute.xlu0 %103
    %105 = vrot.lane.b32.xlu0 %v27, 112
    %v106 = vpop.permute.xlu0 %105
    %vm107 = vcmp.lt.s32.totalorder %v29, 112
    %v108 = vsel %vm107, %v104, %v106
    %v109 = vsel %vm107, %v106, %v104
    %v110 = vsel %vm37, %v108, 0.0
    %v111 = vsel %vm38, %v109, 0.0
    %112 = vrot.lane.b32.xlu0 %v26, 111
    %v113 = vpop.permute.xlu0 %112
    %114 = vrot.lane.b32.xlu0 %v27, 111
    %v115 = vpop.permute.xlu0 %114
    %vm116 = vcmp.lt.s32.totalorder %v29, 111
    %v117 = vsel %vm116, %v113, %v115
    %v118 = vsel %vm116, %v115, %v113
    %vm119 = vmand %vm37, %vm41
    %vm120 = vmand %vm38, %vm42
    %v121 = vsel %vm119, %v117, 0.0
    %v122 = vsel %vm120, %v118, 0.0
    %v123 = vld [vmem:[%s1] sm:$0xff]
    %v124 = vld [vmem:[%s1 + $0x8] sm:$0xff]
    %126 = vset.pattern.permute.xlu0 11
    %127 = vperm.xlu0 %126, %v17
    %v128 = vpop.permute.xlu0 %127
    %131 = vset.pattern.permute.xlu0 11
    %132 = vperm.xlu0 %131, %v18
    %v133 = vpop.permute.xlu0 %132
    %vm135 = vcmask 588800
    %v137 = vsel %vm135, %v123, 0
    %v140 = vsel %vm135, %v124, 0
    %142 = vmatprep.subr.mxu0 %v53
    %143 = vmatpush1.msra.mxu0 %v52
    %144 = vmatprep.subr.mxu0 %v62
    %145 = vmatpush1.msra.mxu0 %v61
    %146 = vmatprep.subr.mxu0 %v73
    %147 = vmatpush1.msra.mxu0 %v72
    %148 = vmatprep.subr.mxu0 %v82
    %149 = vmatpush1.msra.mxu0 %v81
    %150 = vmatprep.subr.mxu0 %v27
    %151 = vmatpush1.msra.mxu0 %v26
    %152 = vmatprep.subr.mxu0 %v91
    %153 = vmatpush1.msra.mxu0 %v90
    %154 = vmatprep.subr.mxu0 %v102
    %155 = vmatpush1.msra.mxu0 %v101
    %156 = vmatprep.subr.mxu0 %v111
    %157 = vmatpush1.msra.mxu0 %v110
    %158 = vmatprep.subr.mxu0 %v122
    %159 = vmatpush1.msra.mxu0 %v121
    %160 = vmatprep.subr.mxu0 0.0
    %161 = vmatpush1.msra.mxu0 0.0
    %162 = vmatprep.subr.mxu0 0.0
    %163 = vmatpush1.msra.mxu0 0.0
    %164 = vmatprep.subr.mxu0 0.0
    %165 = vmatpush1.msra.mxu0 0.0
    %166 = vmatprep.subr.mxu0 0.0
    %167 = vmatpush1.msra.mxu0 0.0
    %168 = vmatprep.subr.mxu0 0.0
    %169 = vmatpush1.msra.mxu0 0.0
    %170 = vmatprep.subr.mxu0 0.0
    %171 = vmatpush1.msra.mxu0 0.0
    %172 = vmatprep.subr.mxu0 0.0
    %173 = vmatpush1.msra.mxu0 0.0
    %174 = vmatprep.subr.mxu0 0.0
    %175 = vmatpush1.msra.mxu0 0.0
    %176 = vmatprep.subr.mxu0 0.0
    %177 = vmatpush1.msra.mxu0 0.0
    %178 = vmatprep.subr.mxu0 0.0
    %179 = vmatpush1.msra.mxu0 0.0
    %180 = vmatprep.subr.mxu0 0.0
    %181 = vmatpush1.msra.mxu0 0.0
    %182 = vmatprep.subr.mxu0 0.0
    %183 = vmatpush1.msra.mxu0 0.0
    %184 = vmatprep.subr.mxu0 0.0
    %185 = vmatpush1.msra.mxu0 0.0
    %186 = vmatprep.subr.mxu0 0.0
    %187 = vmatpush1.msra.mxu0 0.0
    %188 = vmatprep.subr.mxu0 0.0
    %189 = vmatpush1.msra.mxu0 0.0
    %190 = vmatprep.subr.mxu0 0.0
    %191 = vmatpush1.msra.mxu0 0.0
    %192 = vmatprep.subr.mxu0 0.0
    %193 = vmatpush1.msra.mxu0 0.0
    %194 = vmatprep.subr.mxu0 0.0
    %195 = vmatpush1.msra.mxu0 0.0
    %196 = vmatprep.subr.mxu0 0.0
    %197 = vmatpush1.msra.mxu0 0.0
    %198 = vmatprep.subr.mxu0 0.0
    %199 = vmatpush1.msra.mxu0 0.0
    %200 = vmatprep.subr.mxu0 0.0
    %201 = vmatpush1.msra.mxu0 0.0
    %202 = vmatprep.subr.mxu0 0.0
    %203 = vmatpush1.msra.mxu0 0.0
    %204 = vmatprep.subr.mxu0 0.0
    %205 = vmatpush1.msra.mxu0 0.0
    %206 = vmatprep.mubr.f32.mxu0 0.0
    %207 = vmatmul.mubr.f32.gmra.mrb[0].mxu0 %v137
    %v208 = vpop.f32.mrb[0].mxu0
    %v209 = vadd.f32 %v128, %v208
    %v210 = vpop.f32.mrb[0].mxu0
    %v211 = vadd.f32 %v128, %v210
    %212 = vmatprep.mubr.f32.mxu0 0.0
    %213 = vmatmul.mubr.f32.gmra.mrb[0].mxu0 %v140
    %v214 = vpop.f32.mrb[0].mxu0
    %v215 = vadd.f32 %v133, %v214
    %v216 = vpop.f32.mrb[0].mxu0
    %v217 = vadd.f32 %v133, %v216
    %218 = vdwg.mxu0
    %v219 = vmax.f32 %v209, 0.0
    %v220 = vmax.f32 %v211, 0.0
    %v221 = vmax.f32 %v215, 0.0
    %v222 = vmax.f32 %v217, 0.0
    %v223 = vadd.f32 %v219, %v220
    %224 = vadd.xlane.f32.xlu0 %v223
    %v225 = vpop.xlane.xlu0 %224
    %v226 = vadd.f32 %v221, %v222
    %227 = vadd.xlane.f32.xlu0 %v226
    %v228 = vpop.xlane.xlu0 %227
    %v229 = vrcp.pop 256.0
    %v230 = vmul.f32 %v225, %v229
    %v231 = vmul.f32 %v228, %v229
    %v232 = vlaneseq
    %v233 = vshrl.u32 %v232, 7
    %v234 = vsub.s32 0, %v233
    %v235 = vrot.slane %v16, %v234
    %v238 = vlaneseq
    %v239 = vshrl.u32 %v238, 7
    %v240 = vsub.s32 %v29, %v239
    %v241 = vrot.slane %v230, %v240
    %v242 = vlaneseq
    %v243 = vshrl.u32 %v242, 7
    %v244 = vsub.s32 %v29, %v243
    %v245 = vrot.slane %v231, %v244
    %vm246 = vcmask 1041409
    %v247 = vsel %vm246, %v245, %v241
    %vm248 = vcmask 64512
    %v249 = vsel %vm248, %v247, 0
    %251 = vmatprep.subr.mxu0 0.0
    %252 = vmatpush1.msra.mxu0 %v15
    %253 = vmatprep.subr.mxu0 0.0
    %254 = vmatpush1.msra.mxu0 0.0
    %255 = vmatprep.subr.mxu0 0.0
    %256 = vmatpush1.msra.mxu0 0.0
    %257 = vmatprep.subr.mxu0 0.0
    %258 = vmatpush1.msra.mxu0 0.0
    %259 = vmatprep.subr.mxu0 0.0
    %260 = vmatpush1.msra.mxu0 0.0
    %261 = vmatprep.subr.mxu0 0.0
    %262 = vmatpush1.msra.mxu0 0.0
    %263 = vmatprep.subr.mxu0 0.0
    %264 = vmatpush1.msra.mxu0 0.0
    %265 = vmatprep.subr.mxu0 0.0
    %266 = vmatpush1.msra.mxu0 0.0
    %267 = vmatprep.subr.mxu0 0.0
    %268 = vmatpush1.msra.mxu0 0.0
    %269 = vmatprep.subr.mxu0 0.0
    %270 = vmatpush1.msra.mxu0 0.0
    %271 = vmatprep.subr.mxu0 0.0
    %272 = vmatpush1.msra.mxu0 0.0
    %273 = vmatprep.subr.mxu0 0.0
    %274 = vmatpush1.msra.mxu0 0.0
    %275 = vmatprep.subr.mxu0 0.0
    %276 = vmatpush1.msra.mxu0 0.0
    %277 = vmatprep.subr.mxu0 0.0
    %278 = vmatpush1.msra.mxu0 0.0
    %279 = vmatprep.subr.mxu0 0.0
    %280 = vmatpush1.msra.mxu0 0.0
    %281 = vmatprep.subr.mxu0 0.0
    %282 = vmatpush1.msra.mxu0 0.0
    %283 = vmatprep.subr.mxu0 0.0
    %284 = vmatpush1.msra.mxu0 0.0
    %285 = vmatprep.subr.mxu0 0.0
    %286 = vmatpush1.msra.mxu0 0.0
    %287 = vmatprep.subr.mxu0 0.0
    %288 = vmatpush1.msra.mxu0 0.0
    %289 = vmatprep.subr.mxu0 0.0
    %290 = vmatpush1.msra.mxu0 0.0
    %291 = vmatprep.subr.mxu0 0.0
    %292 = vmatpush1.msra.mxu0 0.0
    %293 = vmatprep.subr.mxu0 0.0
    %294 = vmatpush1.msra.mxu0 0.0
    %295 = vmatprep.subr.mxu0 0.0
    %296 = vmatpush1.msra.mxu0 0.0
    %297 = vmatprep.subr.mxu0 0.0
    %298 = vmatpush1.msra.mxu0 0.0
    %299 = vmatprep.subr.mxu0 0.0
    %300 = vmatpush1.msra.mxu0 0.0
    %301 = vmatprep.subr.mxu0 0.0
    %302 = vmatpush1.msra.mxu0 0.0
    %303 = vmatprep.subr.mxu0 0.0
    %304 = vmatpush1.msra.mxu0 0.0
    %305 = vmatprep.subr.mxu0 0.0
    %306 = vmatpush1.msra.mxu0 0.0
    %307 = vmatprep.subr.mxu0 0.0
    %308 = vmatpush1.msra.mxu0 0.0
    %309 = vmatprep.subr.mxu0 0.0
    %310 = vmatpush1.msra.mxu0 0.0
    %311 = vmatprep.subr.mxu0 0.0
    %312 = vmatpush1.msra.mxu0 0.0
    %313 = vmatprep.subr.mxu0 0.0
    %314 = vmatpush1.msra.mxu0 0.0
    %315 = vmatprep.mubr.f32.mxu0 0.0
    %316 = vmatmul.mubr.f32.gmra.mrb[0].mxu0 %v249
    %v317 = vpop.f32.mrb[0].mxu0
    %v318 = vadd.f32 %v235, %v317
    %v319 = vpop.f32.mrb[0].mxu0
    %320 = vdwg.mxu0
    %vm321 = vcmask 74752
    %322 = vst.msk [vmem:[#allocation2] sm:$0x3] %vm321, %v318
    // Predicated region
    $region14: #{model_wrapper_forward.1} parent=1 // pred_check
      _
    $region15: #{model_wrapper_forward.1} parent=1 // pred_check_branch
      %324 = sbr.rel (0) target = $region17
    $region16: #{model_wrapper_forward.1} parent=1 // pred_region
      %s326 = ssub.s32 32, 32
      %327 = vsyncadd [#allocation3], %s326
      %s329 = sshll.u32 [#allocation2], 4
      %s330 = int_to_ptr.vmem [resolvable:$true] %s329
      %332 = dma.vmem_to_hbm [thread:$0]  %s330, 32, %s3, [#allocation3]
    $region17: #{model_wrapper_forward.1} parent=1 // pred_fallthru
      _
    // Predicated region
    $region18: #{model_wrapper_forward.1} parent=1 // pred_check
      _
    $region19: #{model_wrapper_forward.1} parent=1 // pred_check_branch
      %334 = sbr.rel (0) target = $region21
    $region20: #{model_wrapper_forward.1} parent=1 // pred_region
      %335 = dma.done [#allocation3], 32
    $region21: #{model_wrapper_forward.1} parent=1 // pred_fallthru
      _
    %336 = vsyncpa [#allocation3], 1

</llo_original>
